<compile_context>
chip_gen: v6e
topology: v6e:2x2x1
jax: 0.10.0
libtpu: 0.0.40
codegen_flags: <defaults>
</compile_context>

<pallas_src>
import functools
import math

import jax
import jax.numpy as jnp
import numpy as np
from jax import lax
from jax.experimental import pallas as pl
from jax.experimental.pallas import tpu as pltpu

_SQRT_HALF = math.sqrt(0.5)


def _weight_norm(v, g):
    """PyTorch weight_norm (default dim=0): per-output-channel norm over (in, k)."""
    norm = jnp.sqrt(jnp.sum(v * v, axis=tuple(range(1, v.ndim)), keepdims=True))
    return g * v / norm


def _round_up(x, m):
    return ((x + m - 1) // m) * m


def _cdiv(a, b):
    return -(-a // b)


def pack_resblock_params(params, kernel_size, compute_dtype=jnp.bfloat16):
    """Fold weight_norm and pack all six convs into MXU-friendly operands.

    Call ONCE per parameter set (outside the per-step jit) and reuse the result.
    Returns a dict of arrays; all static sizes are recovered from shapes later.
    """
    K = kernel_size
    wf = _weight_norm(params["filter_v"], params["filter_g"])            # (O, C_in, K)
    wg = _weight_norm(params["gate_v"], params["gate_g"])                # (O, C_in, K)
    O, C_in, _ = wf.shape
    wfc = _weight_norm(params["filter_c_v"], params["filter_c_g"])[:, :, 0]  # (O, C_cin)
    wgc = _weight_norm(params["gate_c_v"], params["gate_c_g"])[:, :, 0]      # (O, C_cin)
    wres = _weight_norm(params["res_v"], params["res_g"])[:, :, 0]           # (C_in, O)
    wskip = _weight_norm(params["skip_v"], params["skip_g"])[:, :, 0]        # (C_skip, O)

    # Pad each of the filter / gate halves to a 128-lane multiple so the in-kernel
    # split h[:, :Co_pad] / h[:, Co_pad:] lands exactly on vreg boundaries.
    Co_pad = _round_up(O, 128)

    def pad_out(m):  # pad last (output-channel) dim O -> Co_pad with zeros
        return jnp.pad(m, ((0, 0),) * (m.ndim - 1) + ((0, Co_pad - O),))

    wf_k = jnp.transpose(wf, (2, 1, 0))                                   # (K, C_in, O)
    wg_k = jnp.transpose(wg, (2, 1, 0))                                   # (K, C_in, O)
    w1 = jnp.concatenate([pad_out(wf_k), pad_out(wg_k)], axis=-1)         # (K, C_in, 2*Co_pad)
    wc = jnp.concatenate([pad_out(wfc.T), pad_out(wgc.T)], axis=-1)       # (C_cin, 2*Co_pad)
    b1 = jnp.concatenate([
        jnp.pad(params["filter_b"] + params["filter_c_b"], (0, Co_pad - O)),
        jnp.pad(params["gate_b"] + params["gate_c_b"], (0, Co_pad - O)),
    ])[None, :].astype(jnp.float32)                                        # (1, 2*Co_pad)

    # Stage-2: columns [res | skip]; rows >= O are zero (z's padded columns are
    # exactly zero anyway: tanh(0)*sigmoid(0) = 0).
    w2 = jnp.concatenate([wres.T, wskip.T], axis=1)                        # (O, C_in+C_skip)
    w2 = jnp.pad(w2, ((0, Co_pad - O), (0, 0)))                            # (Co_pad, C2)
    b2 = jnp.concatenate([params["res_b"], params["skip_b"]])[None, :].astype(jnp.float32)

    return dict(w1=w1.astype(compute_dtype), wc=wc.astype(compute_dtype), b1=b1,
                w2=w2.astype(compute_dtype), b2=b2)


def _resblock_kernel(bl_ref, x_ref, br_ref, c_ref, w1_ref, wc_ref, b1_ref,
                     w2_ref, b2_ref, out_ref, *, dilation, conv_pad):
    """One (batch, time-tile) grid step: in-kernel dilated-conv taps from a haloed
    row tile, fused filter|gate matmuls, gated activation, fused res|skip matmul,
    residual add, single merged lane-dense store."""
    K, C_in, two_co = w1_ref.shape
    co_pad = two_co // 2
    halo = bl_ref.shape[0] // 2
    tt = x_ref.shape[0]
    cdt = w1_ref.dtype

    x_cur = x_ref[...]                                         # (tt, C_in), orig precision
    # Haloed time window [t0 - halo, t0 + tt + halo) assembled from
    # left-boundary window | current tile | right-boundary window (all in VMEM).
    win = jnp.concatenate(
        [bl_ref[0:halo, :], x_cur, br_ref[halo:2 * halo, :]], axis=0)      # (tt+2H, C_in)

    # ---- stage 1: conditioning 1x1 convs + biases, then K dilated-conv taps ----
    h = jnp.dot(c_ref[...].astype(cdt), wc_ref[...],
                preferred_element_type=jnp.float32)                         # (tt, 2*Co_pad)
    h = h + b1_ref[...]
    for k in range(K):                                          # static unroll over taps
        off = halo - conv_pad + k * dilation                    # static slice offset
        tap = win[off:off + tt, :].astype(cdt)                  # (tt, C_in)
        h = h + jnp.dot(tap, w1_ref[k], preferred_element_type=jnp.float32)

    # Gated activation; split is 128-lane aligned (co_pad is a multiple of 128).
    # TODO(synk): on v7x (3.2 TB/s HBM) re-profile — if EUP becomes binding for
    # C_out=64 configs, drop the lane padding and slice at C_out instead.
    z = jnp.tanh(h[:, :co_pad]) * jax.nn.sigmoid(h[:, co_pad:])             # (tt, Co_pad)

    # ---- stage 2: fused res|skip 1x1 convs ----
    rs = jnp.dot(z.astype(cdt), w2_ref[...],
                 preferred_element_type=jnp.float32) + b2_ref[...]          # (tt, C_in+C_skip)

    # Residual add at the original x precision, then one merged lane-dense store.
    res = (x_cur.astype(jnp.float32) + rs[:, :C_in]) * _SQRT_HALF
    out_ref[...] = jnp.concatenate([res, rs[:, C_in:]], axis=1).astype(out_ref.dtype)


def resblock_forward_tl(x_t, c_t, packed, *, dilation, tm=1024):
    """Channel-last ResBlock forward.

    x_t: (B, T, C_in), c_t: (B, T, C_cin), packed: output of pack_resblock_params.
    Returns (res_t (B, T, C_in), skip_t (B, T, C_skip)), channel-last.
    """
    w1, wc, b1, w2, b2 = packed["w1"], packed["wc"], packed["b1"], packed["w2"], packed["b2"]
    B, T, C_in = x_t.shape
    _, _, C_cin = c_t.shape
    K = w1.shape[0]
    if K % 2 != 1:
        raise ValueError("SAME-mode ResBlock kernel requires odd kernel_size")
    if w1.shape[1] != C_in or wc.shape[0] != C_cin:
        raise ValueError("packed params do not match input channel counts")
    Co_pad = w1.shape[-1] // 2
    C2 = w2.shape[-1]                                   # C_in + C_skip (merged output)
    d = dilation
    P = d * (K - 1) // 2                                # SAME padding
    cdt = w1.dtype

    # ---- tile selection (feedback: large tiles, dtype sublane, >=2 grid steps) ----
    sub = 16 if cdt == jnp.bfloat16 else 8
    tt = min(_round_up(tm, sub), _round_up(T, sub))
    if B * _cdiv(T, tt) < 2:                            # v7x: keep both TCs busy
        half = _round_up(_cdiv(T, 2), sub)
        if sub <= half < tt:
            tt = half
    nT = _cdiv(T, tt)
    T_pad = nT * tt
    H = _round_up(max(P, 1), 8)                         # halo width, sublane-aligned

    # ---- layout prep (cheap: pads + a tiny boundary-window gather, no im2col) ----
    x_tp = jnp.pad(x_t, ((0, 0), (0, T_pad - T), (0, 0)))
    c_tp = jnp.pad(c_t, ((0, 0), (0, T_pad - T), (0, 0)))
    # Boundary halo windows: xb[b, j] = x rows [j*tt - H, j*tt + H) (zeros outside [0, T)).
    x_ext = jnp.pad(x_tp, ((0, 0), (H, H), (0, 0)))
    ridx = (jnp.arange(nT + 1) * tt)[:, None] + jnp.arange(2 * H)[None, :]
    xb = x_ext[:, ridx, :]                              # (B, nT+1, 2H, C_in) — ~2H/tt of x

    # ---- tile-derived VMEM budget (valid on v5e/v6e/v7x) ----
    itx = jnp.dtype(x_t.dtype).itemsize
    itc = jnp.dtype(c_t.dtype).itemsize
    itw = jnp.dtype(cdt).itemsize
    tile_bytes = (tt * C_in * itx + 2 * (2 * H) * C_in * itx
                  + tt * C_cin * itc + tt * C2 * itx)
    wbytes = (w1.size + wc.size + w2.size) * itw + (b1.size + b2.size) * 4
    interm = ((tt + 2 * H) * C_in * itx + K * tt * C_in * itw
              + tt * 2 * Co_pad * 4 + tt * Co_pad * 4 + 2 * tt * C2 * 4)
    vmem_est = 2 * tile_bytes + 2 * wbytes + interm
    vmem_limit = int(min(max(2 * vmem_est, 16 * 2 ** 20), 32 * 2 ** 20))

    cost = pl.CostEstimate(
        flops=int(2 * B * T_pad * ((K * C_in + C_cin) * 2 * Co_pad + Co_pad * C2)),
        transcendentals=int(2 * B * T_pad * Co_pad),
        bytes_accessed=int(x_tp.size * itx + 2 * xb.size * itx + c_tp.size * itc
                           + (w1.size + wc.size + w2.size) * itw
                           + (b1.size + b2.size) * 4 + B * T_pad * C2 * itx),
    )

    kernel = functools.partial(_resblock_kernel, dilation=d, conv_pad=P)

    # TODO(synk): if a v5e profile shows exposed DMA on the x/c row tiles, sweep
    # pipeline_mode=pl.Buffered(3) on those two input specs.
    out = pl.pallas_call(
        kernel,
        out_shape=jax.ShapeDtypeStruct((B, T_pad, C2), x_t.dtype),
        grid=(B, nT),
        in_specs=[
            pl.BlockSpec((None, None, 2 * H, C_in), lambda b, j: (b, j, 0, 0)),      # left halo
            pl.BlockSpec((None, tt, C_in), lambda b, j: (b, j, 0)),                  # x tile
            pl.BlockSpec((None, None, 2 * H, C_in), lambda b, j: (b, j + 1, 0, 0)),  # right halo
            pl.BlockSpec((None, tt, C_cin), lambda b, j: (b, j, 0)),                 # cond tile
            pl.BlockSpec((K, C_in, 2 * Co_pad), lambda b, j: (0, 0, 0)),             # w1
            pl.BlockSpec((C_cin, 2 * Co_pad), lambda b, j: (0, 0)),                  # wc
            pl.BlockSpec((1, 2 * Co_pad), lambda b, j: (0, 0)),                      # b1
            pl.BlockSpec((Co_pad, C2), lambda b, j: (0, 0)),                         # w2
            pl.BlockSpec((1, C2), lambda b, j: (0, 0)),                              # b2
        ],
        out_specs=pl.BlockSpec((None, tt, C2), lambda b, j: (b, j, 0)),              # merged out
        compiler_params=pltpu.CompilerParams(
            dimension_semantics=("parallel", "parallel"),
            vmem_limit_bytes=vmem_limit),
        cost_estimate=cost,
    )(xb, x_tp, xb, c_tp, w1, wc, b1, w2, b2)

    # Padded tail rows [T, T_pad) hold bias-only values; slice them off here.
    res_t = out[:, :T, :C_in]
    skip_t = out[:, :T, C_in:]
    return res_t, skip_t


def resblock_forward(x, c, params, kernel_size, dilation, *, tm=1024,
                     compute_dtype=jnp.bfloat16):
    """NCT-layout convenience wrapper matching the PyTorch module signature.

    For production: pre-pack params once with pack_resblock_params and keep
    activations channel-last across the whole ResBlock stack (call
    resblock_forward_tl directly) to avoid per-block transposes.
    """
    packed = pack_resblock_params(params, kernel_size, compute_dtype=compute_dtype)
    res_t, skip_t = resblock_forward_tl(jnp.swapaxes(x, 1, 2), jnp.swapaxes(c, 1, 2),
                                        packed, dilation=dilation, tm=tm)
    return jnp.swapaxes(res_t, 1, 2), jnp.swapaxes(skip_t, 1, 2)


def reference_forward(x, c, params, kernel_size, dilation):
    """Pure-JAX reference mirroring the PyTorch ResBlock.forward (SAME, non-causal)."""
    K, d = kernel_size, dilation
    P = d * (K - 1) // 2
    wf = _weight_norm(params["filter_v"], params["filter_g"])
    wg = _weight_norm(params["gate_v"], params["gate_g"])
    dn = ("NCH", "OIH", "NCH")
    hf = lax.conv_general_dilated(x, wf, (1,), [(P, P)], rhs_dilation=(d,),
                                  dimension_numbers=dn) + params["filter_b"][None, :, None]
    hg = lax.conv_general_dilated(x, wg, (1,), [(P, P)], rhs_dilation=(d,),
                                  dimension_numbers=dn) + params["gate_b"][None, :, None]
    wfc = _weight_norm(params["filter_c_v"], params["filter_c_g"])[:, :, 0]
    wgc = _weight_norm(params["gate_c_v"], params["gate_c_g"])[:, :, 0]
    hf = hf + jnp.einsum("oc,bct->bot", wfc, c) + params["filter_c_b"][None, :, None]
    hg = hg + jnp.einsum("oc,bct->bot", wgc, c) + params["gate_c_b"][None, :, None]
    z = jnp.tanh(hf) * jax.nn.sigmoid(hg)
    wres = _weight_norm(params["res_v"], params["res_g"])[:, :, 0]
    wskip = _weight_norm(params["skip_v"], params["skip_g"])[:, :, 0]
    res = jnp.einsum("io,bot->bit", wres, z) + params["res_b"][None, :, None]
    skip = jnp.einsum("so,bot->bst", wskip, z) + params["skip_b"][None, :, None]
    return (x + res) * _SQRT_HALF, skip


if __name__ == "__main__":
    B, C_in, C_out, C_skip, C_cin, T = 2, 4, 8, 8, 5, 16
    K, dilation = 3, 2

    key = jax.random.PRNGKey(0)
    ks = jax.random.split(key, 24)

    def nrm(k, shape, s=0.3):
        return jax.random.normal(k, shape, jnp.float32) * s

    params = {
        "filter_v": nrm(ks[0], (C_out, C_in, K)),
        "filter_g": 1.0 + nrm(ks[1], (C_out, 1, 1), 0.2),
        "filter_b": nrm(ks[2], (C_out,), 0.1),
        "gate_v": nrm(ks[3], (C_out, C_in, K)),
        "gate_g": 1.0 + nrm(ks[4], (C_out, 1, 1), 0.2),
        "gate_b": nrm(ks[5], (C_out,), 0.1),
        "filter_c_v": nrm(ks[6], (C_out, C_cin, 1)),
        "filter_c_g": 1.0 + nrm(ks[7], (C_out, 1, 1), 0.2),
        "filter_c_b": nrm(ks[8], (C_out,), 0.1),
        "gate_c_v": nrm(ks[9], (C_out, C_cin, 1)),
        "gate_c_g": 1.0 + nrm(ks[10], (C_out, 1, 1), 0.2),
        "gate_c_b": nrm(ks[11], (C_out,), 0.1),
        "res_v": nrm(ks[12], (C_in, C_out, 1)),
        "res_g": 1.0 + nrm(ks[13], (C_in, 1, 1), 0.2),
        "res_b": nrm(ks[14], (C_in,), 0.1),
        "skip_v": nrm(ks[15], (C_skip, C_out, 1)),
        "skip_g": 1.0 + nrm(ks[16], (C_skip, 1, 1), 0.2),
        "skip_b": nrm(ks[17], (C_skip,), 0.1),
    }
    x = jax.random.normal(ks[18], (B, C_in, T), jnp.float32)
    c = jax.random.normal(ks[19], (B, C_cin, T), jnp.float32)

    res_ref, skip_ref = reference_forward(x, c, params, K, dilation)

    # --- NCT convenience wrapper (module-equivalent interface), default bf16 MXU operands ---
    res_nct, skip_nct = jax.block_until_ready(
        resblock_forward(x, c, params, kernel_size=K, dilation=dilation))
    np.testing.assert_allclose(np.asarray(res_nct), np.asarray(res_ref), rtol=5e-2, atol=5e-2)
    np.testing.assert_allclose(np.asarray(skip_nct), np.asarray(skip_ref), rtol=5e-2, atol=5e-2)

    # --- production path: channel-last, params packed once, jitted core ---
    x_t, c_t = jnp.swapaxes(x, 1, 2), jnp.swapaxes(c, 1, 2)
    fwd = jax.jit(resblock_forward_tl, static_argnames=("dilation", "tm"))

    packed_f32 = pack_resblock_params(params, K, compute_dtype=jnp.float32)
    res_t32, skip_t32 = jax.block_until_ready(fwd(x_t, c_t, packed_f32, dilation=dilation))
    np.testing.assert_allclose(np.asarray(jnp.swapaxes(res_t32, 1, 2)), np.asarray(res_ref),
                               rtol=1e-3, atol=1e-3)
    np.testing.assert_allclose(np.asarray(jnp.swapaxes(skip_t32, 1, 2)), np.asarray(skip_ref),
                               rtol=1e-3, atol=1e-3)

    # --- multi-tile path: T not a multiple of the tile, halos cross tile boundaries ---
    B2, T2 = 1, 50
    x2 = jax.random.normal(ks[20], (B2, C_in, T2), jnp.float32)
    c2 = jax.random.normal(ks[21], (B2, C_cin, T2), jnp.float32)
    res_ref2, skip_ref2 = reference_forward(x2, c2, params, K, dilation)
    res2, skip2 = jax.block_until_ready(
        fwd(jnp.swapaxes(x2, 1, 2), jnp.swapaxes(c2, 1, 2), packed_f32,
            dilation=dilation, tm=16))
    np.testing.assert_allclose(np.asarray(jnp.swapaxes(res2, 1, 2)), np.asarray(res_ref2),
                               rtol=1e-3, atol=1e-3)
    np.testing.assert_allclose(np.asarray(jnp.swapaxes(skip2, 1, 2)), np.asarray(skip_ref2),
                               rtol=1e-3, atol=1e-3)

    print("KERNEL_OK")
</pallas_src>

<mosaic_0001>
module attributes {stable_mosaic.version = 11 : i64} {
  func.func @_resblock_kernel(%arg0: i32, %arg1: i32, %arg2: memref<1x1x16x4xf32, #tpu.memory_space<vmem>>, %arg3: memref<1x16x4xf32, #tpu.memory_space<vmem>>, %arg4: memref<1x1x16x4xf32, #tpu.memory_space<vmem>>, %arg5: memref<1x16x5xf32, #tpu.memory_space<vmem>>, %arg6: memref<3x4x256xbf16, #tpu.memory_space<vmem>>, %arg7: memref<5x256xbf16, #tpu.memory_space<vmem>>, %arg8: memref<1x256xf32, #tpu.memory_space<vmem>>, %arg9: memref<128x12xbf16, #tpu.memory_space<vmem>>, %arg10: memref<1x12xf32, #tpu.memory_space<vmem>>, %arg11: memref<1x16x12xf32, #tpu.memory_space<vmem>>) attributes {dimension_semantics = [#tpu.dimension_semantics<parallel>, #tpu.dimension_semantics<parallel>], iteration_bounds = array<i64: 2, 1>, scalar_prefetch = 0 : i64, scratch_operands = 0 : i64, tpu.core_type = #tpu.core_type<tc>, window_params = [{transform_indices = @transform_0, window_bounds = array<i64: 1, 1, 16, 4>}, {transform_indices = @transform_1, window_bounds = array<i64: 1, 16, 4>}, {transform_indices = @transform_2, window_bounds = array<i64: 1, 1, 16, 4>}, {transform_indices = @transform_3, window_bounds = array<i64: 1, 16, 5>}, {pipeline_mode = #tpu.pipeline_mode<synchronous>, transform_indices = @transform_4, window_bounds = array<i64: 3, 4, 256>}, {pipeline_mode = #tpu.pipeline_mode<synchronous>, transform_indices = @transform_5, window_bounds = array<i64: 5, 256>}, {pipeline_mode = #tpu.pipeline_mode<synchronous>, transform_indices = @transform_6, window_bounds = array<i64: 1, 256>}, {pipeline_mode = #tpu.pipeline_mode<synchronous>, transform_indices = @transform_7, window_bounds = array<i64: 128, 12>}, {pipeline_mode = #tpu.pipeline_mode<synchronous>, transform_indices = @transform_8, window_bounds = array<i64: 1, 12>}, {transform_indices = @transform_9, window_bounds = array<i64: 1, 16, 12>}]} {
    %c0 = arith.constant 0 : index
    %c0_0 = arith.constant 0 : index
    %c0_1 = arith.constant 0 : index
    %0 = vector.load %arg3[%c0, %c0_0, %c0_1] : memref<1x16x4xf32, #tpu.memory_space<vmem>>, vector<1x16x4xf32>
    %1 = vector.shape_cast %0 : vector<1x16x4xf32> to vector<16x4xf32>
    %c0_2 = arith.constant 0 : index
    %c0_3 = arith.constant 0 : index
    %c0_4 = arith.constant 0 : index
    %c0_5 = arith.constant 0 : index
    %2 = vector.load %arg2[%c0_2, %c0_3, %c0_4, %c0_5] : memref<1x1x16x4xf32, #tpu.memory_space<vmem>>, vector<1x1x8x4xf32>
    %3 = vector.shape_cast %2 : vector<1x1x8x4xf32> to vector<8x4xf32>
    %c0_6 = arith.constant 0 : index
    %c0_7 = arith.constant 0 : index
    %c8 = arith.constant 8 : index
    %c0_8 = arith.constant 0 : index
    %4 = vector.load %arg4[%c0_6, %c0_7, %c8, %c0_8] : memref<1x1x16x4xf32, #tpu.memory_space<vmem>>, vector<1x1x8x4xf32>
    %5 = vector.shape_cast %4 : vector<1x1x8x4xf32> to vector<8x4xf32>
    %6 = tpu.concatenate %3, %1, %5 in 0 : vector<8x4xf32>, vector<16x4xf32>, vector<8x4xf32> -> vector<32x4xf32>
    %c0_9 = arith.constant 0 : index
    %c0_10 = arith.constant 0 : index
    %c0_11 = arith.constant 0 : index
    %7 = vector.load %arg5[%c0_9, %c0_10, %c0_11] : memref<1x16x5xf32, #tpu.memory_space<vmem>>, vector<1x16x5xf32>
    %8 = vector.shape_cast %7 : vector<1x16x5xf32> to vector<16x5xf32>
    %9 = arith.truncf %8 : vector<16x5xf32> to vector<16x5xbf16>
    %c0_12 = arith.constant 0 : index
    %c0_13 = arith.constant 0 : index
    %10 = vector.load %arg7[%c0_12, %c0_13] : memref<5x256xbf16, #tpu.memory_space<vmem>>, vector<5x256xbf16>
    %cst = arith.constant dense<0.000000e+00> : vector<16x256xf32>
    %11 = tpu.matmul %9, %10, %cst {dimension_numbers = #tpu.dot_dimension_numbers<[1], [0], [0], [1], [0, 0, 1, 1], [], []>} : vector<16x5xbf16>, vector<5x256xbf16>, vector<16x256xf32> -> vector<16x256xf32>
    %c0_14 = arith.constant 0 : index
    %c0_15 = arith.constant 0 : index
    %12 = vector.load %arg8[%c0_14, %c0_15] : memref<1x256xf32, #tpu.memory_space<vmem>>, vector<1x256xf32>
    %13 = vector.broadcast %12 : vector<1x256xf32> to vector<16x256xf32>
    %14 = arith.addf %11, %13 : vector<16x256xf32>
    %15 = vector.extract_strided_slice %6 {offsets = [6, 0], sizes = [16, 4], strides = [1, 1]} : vector<32x4xf32> to vector<16x4xf32>
    %16 = arith.truncf %15 : vector<16x4xf32> to vector<16x4xbf16>
    %c0_16 = arith.constant 0 : index
    %c0_17 = arith.constant 0 : index
    %c0_18 = arith.constant 0 : index
    %17 = vector.load %arg6[%c0_16, %c0_17, %c0_18] : memref<3x4x256xbf16, #tpu.memory_space<vmem>>, vector<1x4x256xbf16>
    %18 = vector.shape_cast %17 : vector<1x4x256xbf16> to vector<4x256xbf16>
    %cst_19 = arith.constant dense<0.000000e+00> : vector<16x256xf32>
    %19 = tpu.matmul %16, %18, %cst_19 {dimension_numbers = #tpu.dot_dimension_numbers<[1], [0], [0], [1], [0, 0, 1, 1], [], []>} : vector<16x4xbf16>, vector<4x256xbf16>, vector<16x256xf32> -> vector<16x256xf32>
    %20 = arith.addf %14, %19 : vector<16x256xf32>
    %21 = vector.extract_strided_slice %6 {offsets = [8, 0], sizes = [16, 4], strides = [1, 1]} : vector<32x4xf32> to vector<16x4xf32>
    %22 = arith.truncf %21 : vector<16x4xf32> to vector<16x4xbf16>
    %c1 = arith.constant 1 : index
    %c0_20 = arith.constant 0 : index
    %c0_21 = arith.constant 0 : index
    %23 = vector.load %arg6[%c1, %c0_20, %c0_21] : memref<3x4x256xbf16, #tpu.memory_space<vmem>>, vector<1x4x256xbf16>
    %24 = vector.shape_cast %23 : vector<1x4x256xbf16> to vector<4x256xbf16>
    %cst_22 = arith.constant dense<0.000000e+00> : vector<16x256xf32>
    %25 = tpu.matmul %22, %24, %cst_22 {dimension_numbers = #tpu.dot_dimension_numbers<[1], [0], [0], [1], [0, 0, 1, 1], [], []>} : vector<16x4xbf16>, vector<4x256xbf16>, vector<16x256xf32> -> vector<16x256xf32>
    %26 = arith.addf %20, %25 : vector<16x256xf32>
    %27 = vector.extract_strided_slice %6 {offsets = [10, 0], sizes = [16, 4], strides = [1, 1]} : vector<32x4xf32> to vector<16x4xf32>
    %28 = arith.truncf %27 : vector<16x4xf32> to vector<16x4xbf16>
    %c2 = arith.constant 2 : index
    %c0_23 = arith.constant 0 : index
    %c0_24 = arith.constant 0 : index
    %29 = vector.load %arg6[%c2, %c0_23, %c0_24] : memref<3x4x256xbf16, #tpu.memory_space<vmem>>, vector<1x4x256xbf16>
    %30 = vector.shape_cast %29 : vector<1x4x256xbf16> to vector<4x256xbf16>
    %cst_25 = arith.constant dense<0.000000e+00> : vector<16x256xf32>
    %31 = tpu.matmul %28, %30, %cst_25 {dimension_numbers = #tpu.dot_dimension_numbers<[1], [0], [0], [1], [0, 0, 1, 1], [], []>} : vector<16x4xbf16>, vector<4x256xbf16>, vector<16x256xf32> -> vector<16x256xf32>
    %32 = arith.addf %26, %31 : vector<16x256xf32>
    %33 = vector.extract_strided_slice %32 {offsets = [0, 0], sizes = [16, 128], strides = [1, 1]} : vector<16x256xf32> to vector<16x128xf32>
    %34 = math.tanh %33 : vector<16x128xf32>
    %35 = vector.extract_strided_slice %32 {offsets = [0, 128], sizes = [16, 128], strides = [1, 1]} : vector<16x256xf32> to vector<16x128xf32>
    %36 = arith.negf %35 : vector<16x128xf32>
    %37 = math.exp %36 : vector<16x128xf32>
    %cst_26 = arith.constant 1.000000e+00 : f32
    %38 = vector.broadcast %cst_26 : f32 to vector<16x128xf32>
    %39 = arith.addf %38, %37 : vector<16x128xf32>
    %40 = arith.divf %38, %39 : vector<16x128xf32>
    %41 = arith.mulf %34, %40 : vector<16x128xf32>
    %42 = arith.truncf %41 : vector<16x128xf32> to vector<16x128xbf16>
    %c0_27 = arith.constant 0 : index
    %c0_28 = arith.constant 0 : index
    %43 = vector.load %arg9[%c0_27, %c0_28] : memref<128x12xbf16, #tpu.memory_space<vmem>>, vector<128x12xbf16>
    %cst_29 = arith.constant dense<0.000000e+00> : vector<16x12xf32>
    %44 = tpu.matmul %42, %43, %cst_29 {dimension_numbers = #tpu.dot_dimension_numbers<[1], [0], [0], [1], [0, 0, 1, 1], [], []>} : vector<16x128xbf16>, vector<128x12xbf16>, vector<16x12xf32> -> vector<16x12xf32>
    %c0_30 = arith.constant 0 : index
    %c0_31 = arith.constant 0 : index
    %45 = vector.load %arg10[%c0_30, %c0_31] : memref<1x12xf32, #tpu.memory_space<vmem>>, vector<1x12xf32>
    %46 = vector.broadcast %45 : vector<1x12xf32> to vector<16x12xf32>
    %47 = arith.addf %44, %46 : vector<16x12xf32>
    %48 = vector.extract_strided_slice %47 {offsets = [0, 0], sizes = [16, 4], strides = [1, 1]} : vector<16x12xf32> to vector<16x4xf32>
    %49 = arith.addf %1, %48 : vector<16x4xf32>
    %cst_32 = arith.constant 0.707106769 : f32
    %50 = vector.broadcast %cst_32 : f32 to vector<16x4xf32>
    %51 = arith.mulf %49, %50 : vector<16x4xf32>
    %52 = vector.extract_strided_slice %47 {offsets = [0, 4], sizes = [16, 8], strides = [1, 1]} : vector<16x12xf32> to vector<16x8xf32>
    %53 = tpu.concatenate %51, %52 in 1 : vector<16x4xf32>, vector<16x8xf32> -> vector<16x12xf32>
    %c0_33 = arith.constant 0 : index
    %c0_34 = arith.constant 0 : index
    %c0_35 = arith.constant 0 : index
    %54 = vector.load %arg11[%c0_33, %c0_34, %c0_35] : memref<1x16x12xf32, #tpu.memory_space<vmem>>, vector<1x16x12xf32>
    %55 = vector.shape_cast %54 : vector<1x16x12xf32> to vector<16x12xf32>
    %56 = vector.shape_cast %53 : vector<16x12xf32> to vector<1x16x12xf32>
    tpu.vector_store %arg11[%c0_33, %c0_34, %c0_35], %56 {strides = array<i32>} : memref<1x16x12xf32, #tpu.memory_space<vmem>>, vector<1x16x12xf32>,
    return
  }
  func.func @transform_0(%arg0: i32, %arg1: i32) -> (i32, i32, i32, i32) {
    %c0_i32 = arith.constant 0 : i32
    %c0_i32_0 = arith.constant 0 : i32
    %c0_i32_1 = arith.constant 0 : i32
    return %arg0, %arg1, %c0_i32, %c0_i32_0 : i32, i32, i32, i32
  }
  func.func @transform_1(%arg0: i32, %arg1: i32) -> (i32, i32, i32) {
    %c0_i32 = arith.constant 0 : i32
    %c0_i32_0 = arith.constant 0 : i32
    return %arg0, %arg1, %c0_i32 : i32, i32, i32
  }
  func.func @transform_2(%arg0: i32, %arg1: i32) -> (i32, i32, i32, i32) {
    %c1_i32 = arith.constant 1 : i32
    %0 = arith.addi %arg1, %c1_i32 : i32
    %c0_i32 = arith.constant 0 : i32
    %c0_i32_0 = arith.constant 0 : i32
    %c0_i32_1 = arith.constant 0 : i32
    return %arg0, %0, %c0_i32, %c0_i32_0 : i32, i32, i32, i32
  }
  func.func @transform_3(%arg0: i32, %arg1: i32) -> (i32, i32, i32) {
    %c0_i32 = arith.constant 0 : i32
    %c0_i32_0 = arith.constant 0 : i32
    return %arg0, %arg1, %c0_i32 : i32, i32, i32
  }
  func.func @transform_4(%arg0: i32, %arg1: i32) -> (i32, i32, i32) {
    %c0_i32 = arith.constant 0 : i32
    %c0_i32_0 = arith.constant 0 : i32
    %c0_i32_1 = arith.constant 0 : i32
    %c0_i32_2 = arith.constant 0 : i32
    return %c0_i32, %c0_i32_0, %c0_i32_1 : i32, i32, i32
  }
  func.func @transform_5(%arg0: i32, %arg1: i32) -> (i32, i32) {
    %c0_i32 = arith.constant 0 : i32
    %c0_i32_0 = arith.constant 0 : i32
    %c0_i32_1 = arith.constant 0 : i32
    return %c0_i32, %c0_i32_0 : i32, i32
  }
  func.func @transform_6(%arg0: i32, %arg1: i32) -> (i32, i32) {
    %c0_i32 = arith.constant 0 : i32
    %c0_i32_0 = arith.constant 0 : i32
    %c0_i32_1 = arith.constant 0 : i32
    return %c0_i32, %c0_i32_0 : i32, i32
  }
  func.func @transform_7(%arg0: i32, %arg1: i32) -> (i32, i32) {
    %c0_i32 = arith.constant 0 : i32
    %c0_i32_0 = arith.constant 0 : i32
    %c0_i32_1 = arith.constant 0 : i32
    return %c0_i32, %c0_i32_0 : i32, i32
  }
  func.func @transform_8(%arg0: i32, %arg1: i32) -> (i32, i32) {
    %c0_i32 = arith.constant 0 : i32
    %c0_i32_0 = arith.constant 0 : i32
    %c0_i32_1 = arith.constant 0 : i32
    return %c0_i32, %c0_i32_0 : i32, i32
  }
  func.func @transform_9(%arg0: i32, %arg1: i32) -> (i32, i32, i32) {
    %c0_i32 = arith.constant 0 : i32
    %c0_i32_0 = arith.constant 0 : i32
    return %arg0, %arg1, %c0_i32 : i32, i32, i32
  }
}

</mosaic_0001>

<llo_original>
// kernel: tpu_custom_call.1
$region0: #{tpu_custom_call.1}
  #allocation0 [shape = 'u32[]', space=smem, size = 0x4, offset = 0x4, fixed_abs, tag = 'smem constant byte address 0x4 - core index']
  #allocation1 [shape = 'u32[144,128]{1,0:T(1,128)}', space=vmem, size = 0x12000, scoped, tag = 'internal scratch']
  %s0 = inlined_call_operand.vmem [shape: f32[2,2,16,4], index: 0, kind: input, shape index: {}]
  %s1 = inlined_call_operand.vmem [shape: f32[2,16,4], index: 1, kind: input, shape index: {}]
  %s2 = inlined_call_operand.vmem [shape: f32[2,2,16,4], index: 2, kind: input, shape index: {}]
  %s3 = inlined_call_operand.vmem [shape: f32[2,16,5], index: 3, kind: input, shape index: {}]
  %s4 = inlined_call_operand.vmem [shape: bf16[3,4,256], index: 4, kind: input, shape index: {}]
  %s5 = inlined_call_operand.vmem [shape: bf16[5,256], index: 5, kind: input, shape index: {}]
  %s6 = inlined_call_operand.vmem [shape: f32[1,256], index: 6, kind: input, shape index: {}]
  %s7 = inlined_call_operand.vmem [shape: bf16[128,12], index: 7, kind: input, shape index: {}]
  %s8 = inlined_call_operand.vmem [shape: f32[1,12], index: 8, kind: input, shape index: {}]
  %s9 = inlined_call_operand.vmem [shape: f32[2,16,12], index: 9, kind: output, shape index: {}]
  %s10 = sld [smem:[#allocation0]]
  $region69: #{tpu_custom_call.1} parent=0
    _
  %s12 = ssub.s32 1, %s10
  %s13 = scalar_select 0, %s12, %s10
  loop: start=0, step=1, limit=4
  $region2: #{tpu_custom_call.1} parent=0 // loop_pre_header
    _
  $region3: #{tpu_custom_call.1} parent=0 // loop_header
    %s15 = sphi 0, %s19
    %p16 = scmp.ge.s32.totalorder %s15, 4
    %s22 = sphi 0, %s34
    %s23 = sphi 0, %s30
    %s24 = sphi 0, %s22
    %s25 = sphi 0, %s23
    %s26 = sphi 0, %s24
    %s27 = sphi 0, %s25
    %s39 = sphi 0, %s41
    %s42 = sphi 0, %s39
    %s43 = sphi 0, %s42
    %s59 = sphi 0, %s43
    %s67 = sphi 0, %s69
    %s70 = sphi 0, %s67
    %s71 = sphi 0, %s70
    %s87 = sphi 0, %s71
    %s97 = sphi 0, %s99
    %s100 = sphi 0, %s97
    %s101 = sphi 0, %s100
    %s117 = sphi 0, %s101
    %s125 = sphi 0, %s127
    %s128 = sphi 0, %s125
    %s129 = sphi 0, %s128
    %s145 = sphi 0, %s129
    %s149 = sphi 0, %s149
    %s151 = sphi 0, %s149
    %s152 = sphi 0, %s151
    %s166 = sphi 0, %s152
    %s170 = sphi 0, %s170
    %s172 = sphi 0, %s170
    %s173 = sphi 0, %s172
    %s187 = sphi 0, %s173
    %s191 = sphi 0, %s191
    %s193 = sphi 0, %s191
    %s194 = sphi 0, %s193
    %s208 = sphi 0, %s194
    %s212 = sphi 0, %s212
    %s214 = sphi 0, %s212
    %s215 = sphi 0, %s214
    %s229 = sphi 0, %s215
    %s233 = sphi 0, %s233
    %s235 = sphi 0, %s233
    %s236 = sphi 0, %s235
    %s250 = sphi 0, %s236
    %s258 = sphi 0, %s260
    %s261 = sphi 0, %s258
    %s262 = sphi 0, %s261
    %s278 = sphi 0, %s262
  $region4: #{tpu_custom_call.1} parent=0 // loop_header_branch
    %18 = sbr.rel (%p16) target = $region8
  $region5: #{tpu_custom_call.1} parent=0 // loop_body
    %s20 = ssub.s32 %s15, 1
    %s21 = ssub.s32 %s15, 2
    %s28 = sadd.s32 1, %s23
    %p29 = scmp.ge.s32.totalorder %s28, 1
    %s30 = scalar_select %p29, 0, %s28
    %s31 = sadd.s32 1, %s22
    %s32 = scalar_select %p29, %s31, %s22
    %p33 = scmp.ge.s32.totalorder %s32, 2
    %s34 = scalar_select %p33, 0, %s32
    %s35 = ssub.s32 %s22, %s34
    %s36 = ssub.s32 %s23, %s30
    %s37 = sor.u32 %s35, %s36
    %p38 = scmp.eq.s32.totalorder %s37, 0
    %s40 = sadd.s32 %s39, 1
    %s41 = scalar_select %p38, %s39, %s40
    %p44 = pneg %p38
    %p45 = scmp.eq.s32.totalorder %s15, 1
    %p46 = por %p44, %p45
    %p47 = scmp.ne.s32.totalorder %s39, %s42
    %p48 = scmp.eq.s32.totalorder %s15, 0
    %p49 = por %p47, %p48
    %p50 = scmp.ne.s32.totalorder %s39, %s42
    %p51 = scmp.eq.s32.totalorder %s20, 1
    %p52 = por %p50, %p51
    %p53 = scmp.ne.s32.totalorder %s42, %s43
    %p54 = scmp.eq.s32.totalorder %s20, 0
    %p55 = por %p53, %p54
    %p56 = scmp.ne.s32.totalorder %s42, %s43
    %p57 = scmp.eq.s32.totalorder %s21, 1
    %p58 = por %p56, %p57
    %p60 = scmp.ne.s32.totalorder %s43, %s59
    %p61 = scmp.eq.s32.totalorder %s21, 0
    %p62 = por %p60, %p61
    %s63 = ssub.s32 %s22, %s34
    %s64 = ssub.s32 %s23, %s30
    %s65 = sor.u32 %s63, %s64
    %p66 = scmp.eq.s32.totalorder %s65, 0
    %s68 = sadd.s32 %s67, 1
    %s69 = scalar_select %p66, %s67, %s68
    %p72 = pneg %p66
    %p73 = scmp.eq.s32.totalorder %s15, 1
    %p74 = por %p72, %p73
    %p75 = scmp.ne.s32.totalorder %s67, %s70
    %p76 = scmp.eq.s32.totalorder %s15, 0
    %p77 = por %p75, %p76
    %p78 = scmp.ne.s32.totalorder %s67, %s70
    %p79 = scmp.eq.s32.totalorder %s20, 1
    %p80 = por %p78, %p79
    %p81 = scmp.ne.s32.totalorder %s70, %s71
    %p82 = scmp.eq.s32.totalorder %s20, 0
    %p83 = por %p81, %p82
    %p84 = scmp.ne.s32.totalorder %s70, %s71
    %p85 = scmp.eq.s32.totalorder %s21, 1
    %p86 = por %p84, %p85
    %p88 = scmp.ne.s32.totalorder %s71, %s87
    %p89 = scmp.eq.s32.totalorder %s21, 0
    %p90 = por %p88, %p89
    %s91 = sadd.s32 %s23, 1
    %s92 = sadd.s32 %s30, 1
    %s93 = ssub.s32 %s22, %s34
    %s94 = ssub.s32 %s91, %s92
    %s95 = sor.u32 %s93, %s94
    %p96 = scmp.eq.s32.totalorder %s95, 0
    %s98 = sadd.s32 %s97, 1
    %s99 = scalar_select %p96, %s97, %s98
    %p102 = pneg %p96
    %p103 = scmp.eq.s32.totalorder %s15, 1
    %p104 = por %p102, %p103
    %p105 = scmp.ne.s32.totalorder %s97, %s100
    %p106 = scmp.eq.s32.totalorder %s15, 0
    %p107 = por %p105, %p106
    %p108 = scmp.ne.s32.totalorder %s97, %s100
    %p109 = scmp.eq.s32.totalorder %s20, 1
    %p110 = por %p108, %p109
    %p111 = scmp.ne.s32.totalorder %s100, %s101
    %p112 = scmp.eq.s32.totalorder %s20, 0
    %p113 = por %p111, %p112
    %p114 = scmp.ne.s32.totalorder %s100, %s101
    %p115 = scmp.eq.s32.totalorder %s21, 1
    %p116 = por %p114, %p115
    %p118 = scmp.ne.s32.totalorder %s101, %s117
    %p119 = scmp.eq.s32.totalorder %s21, 0
    %p120 = por %p118, %p119
    %s121 = ssub.s32 %s22, %s34
    %s122 = ssub.s32 %s23, %s30
    %s123 = sor.u32 %s121, %s122
    %p124 = scmp.eq.s32.totalorder %s123, 0
    %s126 = sadd.s32 %s125, 1
    %s127 = scalar_select %p124, %s125, %s126
    %p130 = pneg %p124
    %p131 = scmp.eq.s32.totalorder %s15, 1
    %p132 = por %p130, %p131
    %p133 = scmp.ne.s32.totalorder %s125, %s128
    %p134 = scmp.eq.s32.totalorder %s15, 0
    %p135 = por %p133, %p134
    %p136 = scmp.ne.s32.totalorder %s125, %s128
    %p137 = scmp.eq.s32.totalorder %s20, 1
    %p138 = por %p136, %p137
    %p139 = scmp.ne.s32.totalorder %s128, %s129
    %p140 = scmp.eq.s32.totalorder %s20, 0
    %p141 = por %p139, %p140
    %p142 = scmp.ne.s32.totalorder %s128, %s129
    %p143 = scmp.eq.s32.totalorder %s21, 1
    %p144 = por %p142, %p143
    %p146 = scmp.ne.s32.totalorder %s129, %s145
    %p147 = scmp.eq.s32.totalorder %s21, 0
    %p148 = por %p146, %p147
    %s150 = sadd.s32 %s149, 1
    %p153 = scmp.eq.s32.totalorder %s15, 1
    %p154 = scmp.ne.s32.totalorder %s149, %s151
    %p155 = scmp.eq.s32.totalorder %s15, 0
    %p156 = por %p154, %p155
    %p157 = scmp.ne.s32.totalorder %s149, %s151
    %p158 = scmp.eq.s32.totalorder %s20, 1
    %p159 = por %p157, %p158
    %p160 = scmp.ne.s32.totalorder %s151, %s152
    %p161 = scmp.eq.s32.totalorder %s20, 0
    %p162 = por %p160, %p161
    %p163 = scmp.ne.s32.totalorder %s151, %s152
    %p164 = scmp.eq.s32.totalorder %s21, 1
    %p165 = por %p163, %p164
    %p167 = scmp.ne.s32.totalorder %s152, %s166
    %p168 = scmp.eq.s32.totalorder %s21, 0
    %p169 = por %p167, %p168
    %s171 = sadd.s32 %s170, 1
    %p174 = scmp.eq.s32.totalorder %s15, 1
    %p175 = scmp.ne.s32.totalorder %s170, %s172
    %p176 = scmp.eq.s32.totalorder %s15, 0
    %p177 = por %p175, %p176
    %p178 = scmp.ne.s32.totalorder %s170, %s172
    %p179 = scmp.eq.s32.totalorder %s20, 1
    %p180 = por %p178, %p179
    %p181 = scmp.ne.s32.totalorder %s172, %s173
    %p182 = scmp.eq.s32.totalorder %s20, 0
    %p183 = por %p181, %p182
    %p184 = scmp.ne.s32.totalorder %s172, %s173
    %p185 = scmp.eq.s32.totalorder %s21, 1
    %p186 = por %p184, %p185
    %p188 = scmp.ne.s32.totalorder %s173, %s187
    %p189 = scmp.eq.s32.totalorder %s21, 0
    %p190 = por %p188, %p189
    %s192 = sadd.s32 %s191, 1
    %p195 = scmp.eq.s32.totalorder %s15, 1
    %p196 = scmp.ne.s32.totalorder %s191, %s193
    %p197 = scmp.eq.s32.totalorder %s15, 0
    %p198 = por %p196, %p197
    %p199 = scmp.ne.s32.totalorder %s191, %s193
    %p200 = scmp.eq.s32.totalorder %s20, 1
    %p201 = por %p199, %p200
    %p202 = scmp.ne.s32.totalorder %s193, %s194
    %p203 = scmp.eq.s32.totalorder %s20, 0
    %p204 = por %p202, %p203
    %p205 = scmp.ne.s32.totalorder %s193, %s194
    %p206 = scmp.eq.s32.totalorder %s21, 1
    %p207 = por %p205, %p206
    %p209 = scmp.ne.s32.totalorder %s194, %s208
    %p210 = scmp.eq.s32.totalorder %s21, 0
    %p211 = por %p209, %p210
    %s213 = sadd.s32 %s212, 1
    %p216 = scmp.eq.s32.totalorder %s15, 1
    %p217 = scmp.ne.s32.totalorder %s212, %s214
    %p218 = scmp.eq.s32.totalorder %s15, 0
    %p219 = por %p217, %p218
    %p220 = scmp.ne.s32.totalorder %s212, %s214
    %p221 = scmp.eq.s32.totalorder %s20, 1
    %p222 = por %p220, %p221
    %p223 = scmp.ne.s32.totalorder %s214, %s215
    %p224 = scmp.eq.s32.totalorder %s20, 0
    %p225 = por %p223, %p224
    %p226 = scmp.ne.s32.totalorder %s214, %s215
    %p227 = scmp.eq.s32.totalorder %s21, 1
    %p228 = por %p226, %p227
    %p230 = scmp.ne.s32.totalorder %s215, %s229
    %p231 = scmp.eq.s32.totalorder %s21, 0
    %p232 = por %p230, %p231
    %s234 = sadd.s32 %s233, 1
    %p237 = scmp.eq.s32.totalorder %s15, 1
    %p238 = scmp.ne.s32.totalorder %s233, %s235
    %p239 = scmp.eq.s32.totalorder %s15, 0
    %p240 = por %p238, %p239
    %p241 = scmp.ne.s32.totalorder %s233, %s235
    %p242 = scmp.eq.s32.totalorder %s20, 1
    %p243 = por %p241, %p242
    %p244 = scmp.ne.s32.totalorder %s235, %s236
    %p245 = scmp.eq.s32.totalorder %s20, 0
    %p246 = por %p244, %p245
    %p247 = scmp.ne.s32.totalorder %s235, %s236
    %p248 = scmp.eq.s32.totalorder %s21, 1
    %p249 = por %p247, %p248
    %p251 = scmp.ne.s32.totalorder %s236, %s250
    %p252 = scmp.eq.s32.totalorder %s21, 0
    %p253 = por %p251, %p252
    %s254 = ssub.s32 %s22, %s34
    %s255 = ssub.s32 %s23, %s30
    %s256 = sor.u32 %s254, %s255
    %p257 = scmp.eq.s32.totalorder %s256, 0
    %s259 = sadd.s32 %s258, 1
    %s260 = scalar_select %p257, %s258, %s259
    %p263 = pneg %p257
    %p264 = scmp.eq.s32.totalorder %s15, 1
    %p265 = por %p263, %p264
    %p266 = scmp.ne.s32.totalorder %s258, %s261
    %p267 = scmp.eq.s32.totalorder %s15, 0
    %p268 = por %p266, %p267
    %p269 = scmp.ne.s32.totalorder %s258, %s261
    %p270 = scmp.eq.s32.totalorder %s20, 1
    %p271 = por %p269, %p270
    %p272 = scmp.ne.s32.totalorder %s261, %s262
    %p273 = scmp.eq.s32.totalorder %s20, 0
    %p274 = por %p272, %p273
    %p275 = scmp.ne.s32.totalorder %s261, %s262
    %p276 = scmp.eq.s32.totalorder %s21, 1
    %p277 = por %p275, %p276
    %p279 = scmp.ne.s32.totalorder %s262, %s278
    %p280 = scmp.eq.s32.totalorder %s21, 0
    %p281 = por %p279, %p280
    %p282 = scmp.le.s32.totalorder 1, %s15
    %p283 = scmp.lt.s32.totalorder %s15, 3
    %p284 = pnand %p282, %p283
    %p285 = pneg %p284
    // Predicated region
    $region9: #{tpu_custom_call.1} parent=5 // pred_check
      _
    $region10: #{tpu_custom_call.1} parent=5 // pred_check_branch
      %287 = sbr.rel (%p284) target = $region12
    $region11: #{tpu_custom_call.1} parent=5 // pred_region
      %s288 = ssub.s32 %s15, 1
      // Predicated region
      $region13: #{tpu_custom_call.1} parent=11 // pred_check
        %p289 = pneg %p162
      $region14: #{tpu_custom_call.1} parent=11 // pred_check_branch
        %291 = sbr.rel (%p289) target = $region16
      $region15: #{tpu_custom_call.1} parent=11 // pred_region
        _
      $region16: #{tpu_custom_call.1} parent=11 // pred_fallthru
        _
      // Predicated region
      $region17: #{tpu_custom_call.1} parent=11 // pred_check
        %p292 = pneg %p183
      $region18: #{tpu_custom_call.1} parent=11 // pred_check_branch
        %294 = sbr.rel (%p292) target = $region20
      $region19: #{tpu_custom_call.1} parent=11 // pred_region
        _
      $region20: #{tpu_custom_call.1} parent=11 // pred_fallthru
        _
      // Predicated region
      $region21: #{tpu_custom_call.1} parent=11 // pred_check
        %p295 = pneg %p204
      $region22: #{tpu_custom_call.1} parent=11 // pred_check_branch
        %297 = sbr.rel (%p295) target = $region24
      $region23: #{tpu_custom_call.1} parent=11 // pred_region
        _
      $region24: #{tpu_custom_call.1} parent=11 // pred_fallthru
        _
      // Predicated region
      $region25: #{tpu_custom_call.1} parent=11 // pred_check
        %p298 = pneg %p225
      $region26: #{tpu_custom_call.1} parent=11 // pred_check_branch
        %300 = sbr.rel (%p298) target = $region28
      $region27: #{tpu_custom_call.1} parent=11 // pred_region
        _
      $region28: #{tpu_custom_call.1} parent=11 // pred_fallthru
        _
      // Predicated region
      $region29: #{tpu_custom_call.1} parent=11 // pred_check
        %p301 = pneg %p246
      $region30: #{tpu_custom_call.1} parent=11 // pred_check_branch
        %303 = sbr.rel (%p301) target = $region32
      $region31: #{tpu_custom_call.1} parent=11 // pred_region
        _
      $region32: #{tpu_custom_call.1} parent=11 // pred_fallthru
        _
    $region12: #{tpu_custom_call.1} parent=5 // pred_fallthru
      _
    %p304 = scmp.lt.s32.totalorder %s15, 2
    // Predicated region
    $region33: #{tpu_custom_call.1} parent=5 // pred_check
      %p305 = pneg %p304
    $region34: #{tpu_custom_call.1} parent=5 // pred_check_branch
      %307 = sbr.rel (%p305) target = $region36
    $region35: #{tpu_custom_call.1} parent=5 // pred_region
      // Predicated region
      $region37: #{tpu_custom_call.1} parent=35 // pred_check
        %p308 = pneg %p49
      $region38: #{tpu_custom_call.1} parent=35 // pred_check_branch
        %310 = sbr.rel (%p308) target = $region40
      $region39: #{tpu_custom_call.1} parent=35 // pred_region
        %p311 = scmp.lt.s32.totalorder %s22, 1
        %s312 = scalar_select %p311, %s22, 1
        %p313 = scmp.lt.s32.totalorder %s23, 1
        %s314 = scalar_select %p313, %s23, 1
        %s315 = smul.addr %s314, 2
        %s316 = smul.addr %s312, 4
        %s317 = sadd.s32 %s315, %s316
        %s318 = smul.addr %s317, 8
        %s319 = scalar_lea.vmem %s0, %s318
      $region40: #{tpu_custom_call.1} parent=35 // pred_fallthru
        _
      // Predicated region
      $region41: #{tpu_custom_call.1} parent=35 // pred_check
        %p320 = pneg %p77
      $region42: #{tpu_custom_call.1} parent=35 // pred_check_branch
        %322 = sbr.rel (%p320) target = $region44
      $region43: #{tpu_custom_call.1} parent=35 // pred_region
        %s323 = smul.u32 2, %s23
        %p324 = scmp.lt.s32.totalorder %s22, 1
        %s325 = scalar_select %p324, %s22, 1
        %p326 = scmp.lt.s32.totalorder %s323, 1
        %s327 = scalar_select %p326, %s323, 1
        %s328 = smul.addr %s325, 2
        %s329 = sadd.s32 %s327, %s328
        %s330 = smul.addr %s329, 8
        %s331 = scalar_lea.vmem %s1, %s330
        %s332 = smul.u32 2, %s23
      $region44: #{tpu_custom_call.1} parent=35 // pred_fallthru
        _
      // Predicated region
      $region45: #{tpu_custom_call.1} parent=35 // pred_check
        %p333 = pneg %p107
      $region46: #{tpu_custom_call.1} parent=35 // pred_check_branch
        %335 = sbr.rel (%p333) target = $region48
      $region47: #{tpu_custom_call.1} parent=35 // pred_region
        %s336 = sadd.s32 %s23, 1
        %p337 = scmp.lt.s32.totalorder %s22, 1
        %s338 = scalar_select %p337, %s22, 1
        %p339 = scmp.lt.s32.totalorder %s336, 1
        %s340 = scalar_select %p339, %s336, 1
        %s341 = smul.addr %s340, 2
        %s342 = smul.addr %s338, 4
        %s343 = sadd.s32 %s341, %s342
        %s344 = smul.addr %s343, 8
        %s345 = scalar_lea.vmem %s2, %s344
        %s346 = sadd.s32 %s23, 1
      $region48: #{tpu_custom_call.1} parent=35 // pred_fallthru
        _
      // Predicated region
      $region49: #{tpu_custom_call.1} parent=35 // pred_check
        %p347 = pneg %p135
      $region50: #{tpu_custom_call.1} parent=35 // pred_check_branch
        %349 = sbr.rel (%p347) target = $region52
      $region51: #{tpu_custom_call.1} parent=35 // pred_region
        %s350 = smul.u32 2, %s23
        %p351 = scmp.lt.s32.totalorder %s22, 1
        %s352 = scalar_select %p351, %s22, 1
        %p353 = scmp.lt.s32.totalorder %s350, 1
        %s354 = scalar_select %p353, %s350, 1
        %s355 = smul.addr %s352, 2
        %s356 = sadd.s32 %s354, %s355
        %s357 = smul.addr %s356, 8
        %s358 = scalar_lea.vmem %s3, %s357
        %s359 = smul.u32 2, %s23
      $region52: #{tpu_custom_call.1} parent=35 // pred_fallthru
        _
    $region36: #{tpu_custom_call.1} parent=5 // pred_fallthru
      _
    %p360 = scmp.le.s32.totalorder 1, %s15
    %p361 = scmp.lt.s32.totalorder %s15, 3
    %p362 = pnand %p360, %p361
    %p363 = pneg %p362
    // Predicated region
    $region53: #{tpu_custom_call.1} parent=5 // pred_check
      _
    $region54: #{tpu_custom_call.1} parent=5 // pred_check_branch
      %365 = sbr.rel (%p362) target = $region56
    $region55: #{tpu_custom_call.1} parent=5 // pred_region
      %s366 = ssub.s32 %s15, 1
      %p367 = scmp.lt.s32.totalorder %s24, 1
      %s368 = scalar_select %p367, %s24, 1
      %p369 = scmp.lt.s32.totalorder %s25, 1
      %s370 = scalar_select %p369, %s25, 1
      %s371 = smul.addr %s370, 2
      %s372 = smul.addr %s368, 4
      %s373 = sadd.s32 %s371, %s372
      %s374 = smul.addr %s373, 8
      %s375 = scalar_lea.vmem %s0, %s374
      %p376 = pneg %p55
      %p377 = pneg %p52
      %s378 = smul.u32 2, %s25
      %p379 = scmp.lt.s32.totalorder %s24, 1
      %s380 = scalar_select %p379, %s24, 1
      %p381 = scmp.lt.s32.totalorder %s378, 1
      %s382 = scalar_select %p381, %s378, 1
      %s383 = smul.addr %s380, 2
      %s384 = sadd.s32 %s382, %s383
      %s385 = smul.addr %s384, 8
      %s386 = scalar_lea.vmem %s1, %s385
      %p387 = pneg %p83
      %p388 = pneg %p80
      %s389 = sadd.s32 %s25, 1
      %p390 = scmp.lt.s32.totalorder %s24, 1
      %s391 = scalar_select %p390, %s24, 1
      %p392 = scmp.lt.s32.totalorder %s389, 1
      %s393 = scalar_select %p392, %s389, 1
      %s394 = smul.addr %s393, 2
      %s395 = smul.addr %s391, 4
      %s396 = sadd.s32 %s394, %s395
      %s397 = smul.addr %s396, 8
      %s398 = scalar_lea.vmem %s2, %s397
      %p399 = pneg %p113
      %p400 = pneg %p110
      %s401 = smul.u32 2, %s25
      %p402 = scmp.lt.s32.totalorder %s24, 1
      %s403 = scalar_select %p402, %s24, 1
      %p404 = scmp.lt.s32.totalorder %s401, 1
      %s405 = scalar_select %p404, %s401, 1
      %s406 = smul.addr %s403, 2
      %s407 = sadd.s32 %s405, %s406
      %s408 = smul.addr %s407, 8
      %s409 = scalar_lea.vmem %s3, %s408
      %p410 = pneg %p141
      %p411 = pneg %p138
      %p412 = pneg %p162
      %p413 = pneg %p159
      %p414 = pneg %p183
      %p415 = pneg %p180
      %p416 = pneg %p204
      %p417 = pneg %p201
      %p418 = pneg %p225
      %p419 = pneg %p222
      %p420 = pneg %p246
      %p421 = pneg %p243
      %p422 = pneg %p274
      %p423 = pneg %p271
      %s424 = smul.u32 2, %s25
      %p425 = scmp.lt.s32.totalorder %s24, 1
      %s426 = scalar_select %p425, %s24, 1
      %p427 = scmp.lt.s32.totalorder %s424, 1
      %s428 = scalar_select %p427, %s424, 1
      %s429 = smul.addr %s426, 2
      %s430 = sadd.s32 %s428, %s429
      %s431 = smul.addr %s430, 8
      %s432 = scalar_lea.vmem %s9, %s431
      %p433 = scmp.lt.s32.totalorder %s24, 1
      %s434 = scalar_select %p433, %s24, 1
      %p435 = scmp.lt.s32.totalorder %s25, 1
      %s436 = scalar_select %p435, %s25, 1
      %s437 = smul.addr %s436, 2
      %s438 = smul.addr %s434, 4
      %s439 = sadd.s32 %s437, %s438
      %s440 = smul.addr %s439, 8
      %s441 = scalar_lea.vmem %s0, %s440
      %s442 = smul.u32 2, %s25
      %p443 = scmp.lt.s32.totalorder %s24, 1
      %s444 = scalar_select %p443, %s24, 1
      %p445 = scmp.lt.s32.totalorder %s442, 1
      %s446 = scalar_select %p445, %s442, 1
      %s447 = smul.addr %s444, 2
      %s448 = sadd.s32 %s446, %s447
      %s449 = smul.addr %s448, 8
      %s450 = scalar_lea.vmem %s1, %s449
      %s451 = smul.u32 2, %s25
      %s452 = sadd.s32 %s25, 1
      %p453 = scmp.lt.s32.totalorder %s24, 1
      %s454 = scalar_select %p453, %s24, 1
      %p455 = scmp.lt.s32.totalorder %s452, 1
      %s456 = scalar_select %p455, %s452, 1
      %s457 = smul.addr %s456, 2
      %s458 = smul.addr %s454, 4
      %s459 = sadd.s32 %s457, %s458
      %s460 = smul.addr %s459, 8
      %s461 = scalar_lea.vmem %s2, %s460
      %s462 = sadd.s32 %s25, 1
      %s463 = smul.u32 2, %s25
      %p464 = scmp.lt.s32.totalorder %s24, 1
      %s465 = scalar_select %p464, %s24, 1
      %p466 = scmp.lt.s32.totalorder %s463, 1
      %s467 = scalar_select %p466, %s463, 1
      %s468 = smul.addr %s465, 2
      %s469 = sadd.s32 %s467, %s468
      %s470 = smul.addr %s469, 8
      %s471 = scalar_lea.vmem %s3, %s470
      %s472 = smul.u32 2, %s25
      %s473 = smul.u32 2, %s25
      %p474 = scmp.lt.s32.totalorder %s24, 1
      %s475 = scalar_select %p474, %s24, 1
      %p476 = scmp.lt.s32.totalorder %s473, 1
      %s477 = scalar_select %p476, %s473, 1
      %s478 = smul.addr %s475, 2
      %s479 = sadd.s32 %s477, %s478
      %s480 = smul.addr %s479, 8
      %s481 = scalar_lea.vmem %s9, %s480
      %s482 = smul.u32 2, %s25
      %v484 = vld [vmem:[%s450] sm:$0xff]
      %v485 = vld [vmem:[%s450 + $0x8] sm:$0xff]
      %v486 = vld [vmem:[%s441] sm:$0xff]
      %v487 = vld [vmem:[%s461 + $0x8] sm:$0xff]
      %v488 = vld [vmem:[%s471] sm:$0xff]
      %v489 = vld [vmem:[%s471 + $0x8] sm:$0xff]
      %v490 = vpack.c.bf16 %v489, %v488
      %v491 = vld [vmem:[%s5] sm:$0x77]
      %v492 = vld [vmem:[%s6] sm:$0x3]
      %v494 = vlaneseq
      %v495 = vshrl.u32 %v494, 7
      %v496 = vsub.s32 0, %v495
      %v497 = vrot.slane %v492, %v496
      %v498 = vlaneseq
      %v499 = vshrl.u32 %v498, 7
      %v500 = vsub.s32 1, %v499
      %v501 = vrot.slane %v492, %v500
      %v505 = vunpack.c.l.b16 %v491
      %v506 = vunpack.c.h.b16 %v491
      %v507 = vpack.c.b16 %v505, %v505
      %v508 = vpack.c.b16 %v506, %v506
      %vm509 = vcmask 39936
      %v511 = vsel %vm509, %v490, 0
      %vm513 = vcmask 1041408
      %vm514 = vcmask 1042432
      %v515 = vsel %vm513, 4294967295, 65535
      %v516 = vsel %vm514, %v515, 0
      %v518 = vand.u32 %v507, %v516
      %v521 = vand.u32 %v508, %v516
      %523 = vmatprep.subr.bf16.mxu0 0
      %524 = vmatpush1.bf16.msra.mxu0 0
      %525 = vmatprep.subr.bf16.mxu0 0
      %526 = vmatpush1.bf16.msra.mxu0 0
      %527 = vmatprep.subr.bf16.mxu0 0
      %528 = vmatpush1.bf16.msra.mxu0 0
      %529 = vmatprep.subr.bf16.mxu0 0
      %530 = vmatpush1.bf16.msra.mxu0 0
      %531 = vmatprep.subr.bf16.mxu0 0
      %532 = vmatpush1.bf16.msra.mxu0 0
      %533 = vmatprep.subr.bf16.mxu0 0
      %534 = vmatpush1.bf16.msra.mxu0 0
      %535 = vmatprep.subr.bf16.mxu0 0
      %536 = vmatpush1.bf16.msra.mxu0 0
      %537 = vmatprep.subr.bf16.mxu0 %v521
      %538 = vmatpush1.bf16.msra.mxu0 %v518
      %539 = vmatprep.subr.bf16.mxu0 0
      %540 = vmatpush2.bf16.msra.mxu0 0
      %541 = vmatprep.subr.bf16.mxu0 0
      %542 = vmatpush2.bf16.msra.mxu0 0
      %543 = vmatprep.subr.bf16.mxu0 0
      %544 = vmatpush2.bf16.msra.mxu0 0
      %545 = vmatprep.subr.bf16.mxu0 0
      %546 = vmatpush2.bf16.msra.mxu0 0
      %547 = vmatprep.subr.bf16.mxu0 0
      %548 = vmatpush2.bf16.msra.mxu0 0
      %549 = vmatprep.subr.bf16.mxu0 0
      %550 = vmatpush2.bf16.msra.mxu0 0
      %551 = vmatprep.subr.bf16.mxu0 0
      %552 = vmatpush2.bf16.msra.mxu0 0
      %553 = vmatprep.subr.bf16.mxu0 0
      %554 = vmatpush2.bf16.msra.mxu0 0
      %555 = vmatprep.mubr.bf16.mxu0 0
      %556 = vmatmul.mubr.bf16.gmra.mxu0 %v511
      %v557 = vpop.f32.mrf.mxu0
      %v558 = vadd.f32 %v497, %v557
      %v559 = vpop.f32.mrf.mxu0
      %v560 = vadd.f32 %v501, %v559
      %v561 = vpop.f32.mrf.mxu0
      %v562 = vadd.f32 %v497, %v561
      %v563 = vpop.f32.mrf.mxu0
      %v564 = vadd.f32 %v501, %v563
      %565 = vdwg.mxu0
      %v566 = vpack.c.bf16 %v484, %v486
      %v567 = vpack.c.bf16 %v485, %v485
      %v568 = vld [vmem:[%s4] sm:$0xf]
      %vm571 = vcmask 1044480
      %v572 = vrot.slane %v566, 3
      %v573 = vrot.slane %v567, 3
      %v574 = vsel %vm571, %v572, %v573
      %v577 = vunpack.c.l.s4 1983009808
      %v578 = vunpack.c.0.s8 %v577
      %v579 = vlaneseq
      %v580 = vshrl.u32 %v579, 7
      %v581 = vsub.s32 %v578, %v580
      %v582 = vrot.slane %v568, %v581
      %v583 = vcombine.high %v582, %v582
      %vm584 = vcmask 31744
      %v586 = vsel %vm584, %v574, 0
      %v589 = vsel %vm513, %v582, 0
      %v592 = vsel %vm513, %v583, 0
      %594 = vmatprep.subr.bf16.mxu0 0
      %595 = vmatpush1.bf16.msra.mxu0 0
      %596 = vmatprep.subr.bf16.mxu0 0
      %597 = vmatpush1.bf16.msra.mxu0 0
      %598 = vmatprep.subr.bf16.mxu0 0
      %599 = vmatpush1.bf16.msra.mxu0 0
      %600 = vmatprep.subr.bf16.mxu0 0
      %601 = vmatpush1.bf16.msra.mxu0 0
      %602 = vmatprep.subr.bf16.mxu0 0
      %603 = vmatpush1.bf16.msra.mxu0 0
      %604 = vmatprep.subr.bf16.mxu0 0
      %605 = vmatpush1.bf16.msra.mxu0 0
      %606 = vmatprep.subr.bf16.mxu0 0
      %607 = vmatpush1.bf16.msra.mxu0 0
      %608 = vmatprep.subr.bf16.mxu0 %v592
      %609 = vmatpush1.bf16.msra.mxu0 %v589
      %610 = vmatprep.subr.bf16.mxu0 0
      %611 = vmatpush2.bf16.msra.mxu0 0
      %612 = vmatprep.subr.bf16.mxu0 0
      %613 = vmatpush2.bf16.msra.mxu0 0
      %614 = vmatprep.subr.bf16.mxu0 0
      %615 = vmatpush2.bf16.msra.mxu0 0
      %616 = vmatprep.subr.bf16.mxu0 0
      %617 = vmatpush2.bf16.msra.mxu0 0
      %618 = vmatprep.subr.bf16.mxu0 0
      %619 = vmatpush2.bf16.msra.mxu0 0
      %620 = vmatprep.subr.bf16.mxu0 0
      %621 = vmatpush2.bf16.msra.mxu0 0
      %622 = vmatprep.subr.bf16.mxu0 0
      %623 = vmatpush2.bf16.msra.mxu0 0
      %624 = vmatprep.subr.bf16.mxu0 0
      %625 = vmatpush2.bf16.msra.mxu0 0
      %626 = vmatprep.mubr.bf16.mxu0 0
      %627 = vmatmul.mubr.bf16.gmra.mxu0 %v586
      %v628 = vpop.f32.mrf.mxu0
      %v629 = vadd.f32 0.0, %v628
      %v630 = vpop.f32.mrf.mxu0
      %v631 = vadd.f32 0.0, %v630
      %v632 = vpop.f32.mrf.mxu0
      %v633 = vadd.f32 0.0, %v632
      %v634 = vpop.f32.mrf.mxu0
      %v635 = vadd.f32 0.0, %v634
      %636 = vdwg.mxu0
      %v637 = vadd.f32 %v558, %v629
      %v638 = vadd.f32 %v560, %v631
      %v639 = vadd.f32 %v562, %v633
      %v640 = vadd.f32 %v564, %v635
      %v641 = vpack.c.bf16 %v485, %v484
      %s642 = scalar_lea.vmem %s4, 4
      %v643 = vld [vmem:[%s642] sm:$0xf]
      %v646 = vunpack.c.l.s4 1983009808
      %v647 = vunpack.c.0.s8 %v646
      %v648 = vlaneseq
      %v649 = vshrl.u32 %v648, 7
      %v650 = vsub.s32 %v647, %v649
      %v651 = vrot.slane %v643, %v650
      %v652 = vcombine.high %v651, %v651
      %v654 = vsel %vm584, %v641, 0
      %v657 = vsel %vm513, %v651, 0
      %v660 = vsel %vm513, %v652, 0
      %662 = vmatprep.subr.bf16.mxu0 0
      %663 = vmatpush1.bf16.msra.mxu0 0
      %664 = vmatprep.subr.bf16.mxu0 0
      %665 = vmatpush1.bf16.msra.mxu0 0
      %666 = vmatprep.subr.bf16.mxu0 0
      %667 = vmatpush1.bf16.msra.mxu0 0
      %668 = vmatprep.subr.bf16.mxu0 0
      %669 = vmatpush1.bf16.msra.mxu0 0
      %670 = vmatprep.subr.bf16.mxu0 0
      %671 = vmatpush1.bf16.msra.mxu0 0
      %672 = vmatprep.subr.bf16.mxu0 0
      %673 = vmatpush1.bf16.msra.mxu0 0
      %674 = vmatprep.subr.bf16.mxu0 0
      %675 = vmatpush1.bf16.msra.mxu0 0
      %676 = vmatprep.subr.bf16.mxu0 %v660
      %677 = vmatpush1.bf16.msra.mxu0 %v657
      %678 = vmatprep.subr.bf16.mxu0 0
      %679 = vmatpush2.bf16.msra.mxu0 0
      %680 = vmatprep.subr.bf16.mxu0 0
      %681 = vmatpush2.bf16.msra.mxu0 0
      %682 = vmatprep.subr.bf16.mxu0 0
      %683 = vmatpush2.bf16.msra.mxu0 0
      %684 = vmatprep.subr.bf16.mxu0 0
      %685 = vmatpush2.bf16.msra.mxu0 0
      %686 = vmatprep.subr.bf16.mxu0 0
      %687 = vmatpush2.bf16.msra.mxu0 0
      %688 = vmatprep.subr.bf16.mxu0 0
      %689 = vmatpush2.bf16.msra.mxu0 0
      %690 = vmatprep.subr.bf16.mxu0 0
      %691 = vmatpush2.bf16.msra.mxu0 0
      %692 = vmatprep.subr.bf16.mxu0 0
      %693 = vmatpush2.bf16.msra.mxu0 0
      %694 = vmatprep.mubr.bf16.mxu0 0
      %695 = vmatmul.mubr.bf16.gmra.mxu0 %v654
      %v696 = vpop.f32.mrf.mxu0
      %v697 = vadd.f32 0.0, %v696
      %v698 = vpop.f32.mrf.mxu0
      %v699 = vadd.f32 0.0, %v698
      %v700 = vpop.f32.mrf.mxu0
      %v701 = vadd.f32 0.0, %v700
      %v702 = vpop.f32.mrf.mxu0
      %v703 = vadd.f32 0.0, %v702
      %704 = vdwg.mxu0
      %v705 = vadd.f32 %v637, %v697
      %v706 = vadd.f32 %v638, %v699
      %v707 = vadd.f32 %v639, %v701
      %v708 = vadd.f32 %v640, %v703
      %v709 = vpack.c.bf16 %v487, %v487
      %s710 = scalar_lea.vmem %s4, 8
      %v711 = vld [vmem:[%s710] sm:$0xf]
      %vm714 = vcmask 1046528
      %v715 = vrot.slane %v641, 1
      %v716 = vrot.slane %v709, 1
      %v717 = vsel %vm714, %v715, %v716
      %v720 = vunpack.c.l.s4 1983009808
      %v721 = vunpack.c.0.s8 %v720
      %v722 = vlaneseq
      %v723 = vshrl.u32 %v722, 7
      %v724 = vsub.s32 %v721, %v723
      %v725 = vrot.slane %v711, %v724
      %v726 = vcombine.high %v725, %v725
      %v728 = vsel %vm584, %v717, 0
      %v731 = vsel %vm513, %v725, 0
      %v734 = vsel %vm513, %v726, 0
      %736 = vmatprep.subr.bf16.mxu0 0
      %737 = vmatpush1.bf16.msra.mxu0 0
      %738 = vmatprep.subr.bf16.mxu0 0
      %739 = vmatpush1.bf16.msra.mxu0 0
      %740 = vmatprep.subr.bf16.mxu0 0
      %741 = vmatpush1.bf16.msra.mxu0 0
      %742 = vmatprep.subr.bf16.mxu0 0
      %743 = vmatpush1.bf16.msra.mxu0 0
      %744 = vmatprep.subr.bf16.mxu0 0
      %745 = vmatpush1.bf16.msra.mxu0 0
      %746 = vmatprep.subr.bf16.mxu0 0
      %747 = vmatpush1.bf16.msra.mxu0 0
      %748 = vmatprep.subr.bf16.mxu0 0
      %749 = vmatpush1.bf16.msra.mxu0 0
      %750 = vmatprep.subr.bf16.mxu0 %v734
      %751 = vmatpush1.bf16.msra.mxu0 %v731
      %752 = vmatprep.subr.bf16.mxu0 0
      %753 = vmatpush2.bf16.msra.mxu0 0
      %754 = vmatprep.subr.bf16.mxu0 0
      %755 = vmatpush2.bf16.msra.mxu0 0
      %756 = vmatprep.subr.bf16.mxu0 0
      %757 = vmatpush2.bf16.msra.mxu0 0
      %758 = vmatprep.subr.bf16.mxu0 0
      %759 = vmatpush2.bf16.msra.mxu0 0
      %760 = vmatprep.subr.bf16.mxu0 0
      %761 = vmatpush2.bf16.msra.mxu0 0
      %762 = vmatprep.subr.bf16.mxu0 0
      %763 = vmatpush2.bf16.msra.mxu0 0
      %764 = vmatprep.subr.bf16.mxu0 0
      %765 = vmatpush2.bf16.msra.mxu0 0
      %766 = vmatprep.subr.bf16.mxu0 0
      %767 = vmatpush2.bf16.msra.mxu0 0
      %768 = vmatprep.mubr.bf16.mxu0 0
      %769 = vmatmul.mubr.bf16.gmra.mxu0 %v728
      %v770 = vpop.f32.mrf.mxu0
      %v771 = vadd.f32 0.0, %v770
      %v772 = vpop.f32.mrf.mxu0
      %v773 = vadd.f32 0.0, %v772
      %v774 = vpop.f32.mrf.mxu0
      %v775 = vadd.f32 0.0, %v774
      %v776 = vpop.f32.mrf.mxu0
      %v777 = vadd.f32 0.0, %v776
      %778 = vdwg.mxu0
      %v779 = vadd.f32 %v705, %v771
      %v780 = vadd.f32 %v706, %v773
      %v781 = vadd.f32 %v707, %v775
      %v782 = vadd.f32 %v708, %v777
      %v783 = vtanh.pop %v779
      %v784 = vtanh.pop %v781
      %v785 = vxor.u32 %v780, 2147483648
      %v786 = vxor.u32 %v782, 2147483648
      %v787 = vmul.f32 %v785, 1.442695
      %v788 = vpow.pop %v787
      %v789 = vmul.f32 %v786, 1.442695
      %v790 = vpow.pop %v789
      %v791 = vadd.f32 %v788, 1.0
      %v792 = vadd.f32 %v790, 1.0
      %v793 = vrcp.pop %v791
      %v794 = vmul.f32 1.0, %v793
      %v795 = vrcp.pop %v792
      %v796 = vmul.f32 1.0, %v795
      %v797 = vmul.f32 %v783, %v794
      %v798 = vmul.f32 %v784, %v796
      %v799 = vpack.c.bf16 %v798, %v797
      %v800 = vld [vmem:[%s7] sm:$0xf]
      %v801 = vld [vmem:[%s7 + $0x4] sm:$0xf]
      %v802 = vld [vmem:[%s7 + $0x8] sm:$0xf]
      %v803 = vld [vmem:[%s7 + $0xc] sm:$0xf]
      %v804 = vld [vmem:[%s7 + $0x10] sm:$0xf]
      %v805 = vld [vmem:[%s7 + $0x14] sm:$0xf]
      %v806 = vld [vmem:[%s7 + $0x18] sm:$0xf]
      %v807 = vld [vmem:[%s7 + $0x1c] sm:$0xf]
      %v808 = vld [vmem:[%s7 + $0x20] sm:$0xf]
      %v809 = vld [vmem:[%s7 + $0x24] sm:$0xf]
      %v810 = vld [vmem:[%s7 + $0x28] sm:$0xf]
      %v811 = vld [vmem:[%s7 + $0x2c] sm:$0xf]
      %v812 = vld [vmem:[%s7 + $0x30] sm:$0xf]
      %v813 = vld [vmem:[%s7 + $0x34] sm:$0xf]
      %v814 = vld [vmem:[%s7 + $0x38] sm:$0xf]
      %v815 = vld [vmem:[%s7 + $0x3c] sm:$0xf]
      %v816 = vld [vmem:[%s8] sm:$0x1]
      %v818 = vlaneseq
      %v819 = vshrl.u32 %v818, 7
      %v820 = vsub.s32 0, %v819
      %v821 = vrot.slane %v816, %v820
      %v839 = vunpack.c.l.b16 %v800
      %v840 = vunpack.c.l.b16 %v801
      %v841 = vunpack.c.l.b16 %v802
      %v842 = vunpack.c.l.b16 %v803
      %v843 = vunpack.c.l.b16 %v804
      %v844 = vunpack.c.l.b16 %v805
      %v845 = vunpack.c.l.b16 %v806
      %v846 = vunpack.c.l.b16 %v807
      %v847 = vunpack.c.l.b16 %v808
      %v848 = vunpack.c.l.b16 %v809
      %v849 = vunpack.c.l.b16 %v810
      %v850 = vunpack.c.l.b16 %v811
      %v851 = vunpack.c.l.b16 %v812
      %v852 = vunpack.c.l.b16 %v813
      %v853 = vunpack.c.l.b16 %v814
      %v854 = vunpack.c.l.b16 %v815
      %v855 = vpack.c.b16 %v840, %v839
      %v856 = vpack.c.b16 %v842, %v841
      %v857 = vpack.c.b16 %v844, %v843
      %v858 = vpack.c.b16 %v846, %v845
      %v859 = vpack.c.b16 %v848, %v847
      %v860 = vpack.c.b16 %v850, %v849
      %v861 = vpack.c.b16 %v852, %v851
      %v862 = vpack.c.b16 %v854, %v853
      %871 = vmatprep.subr.bf16.mxu0 0
      %872 = vmatpush1.bf16.msra.mxu0 %v862
      %873 = vmatprep.subr.bf16.mxu0 0
      %874 = vmatpush1.bf16.msra.mxu0 %v861
      %875 = vmatprep.subr.bf16.mxu0 0
      %876 = vmatpush1.bf16.msra.mxu0 %v860
      %877 = vmatprep.subr.bf16.mxu0 0
      %878 = vmatpush1.bf16.msra.mxu0 %v859
      %879 = vmatprep.subr.bf16.mxu0 0
      %880 = vmatpush1.bf16.msra.mxu0 %v858
      %881 = vmatprep.subr.bf16.mxu0 0
      %882 = vmatpush1.bf16.msra.mxu0 %v857
      %883 = vmatprep.subr.bf16.mxu0 0
      %884 = vmatpush1.bf16.msra.mxu0 %v856
      %885 = vmatprep.subr.bf16.mxu0 0
      %886 = vmatpush1.bf16.msra.mxu0 %v855
      %887 = vmatprep.subr.bf16.mxu0 0
      %888 = vmatpush2.bf16.msra.mxu0 0
      %889 = vmatprep.subr.bf16.mxu0 0
      %890 = vmatpush2.bf16.msra.mxu0 0
      %891 = vmatprep.subr.bf16.mxu0 0
      %892 = vmatpush2.bf16.msra.mxu0 0
      %893 = vmatprep.subr.bf16.mxu0 0
      %894 = vmatpush2.bf16.msra.mxu0 0
      %895 = vmatprep.subr.bf16.mxu0 0
      %896 = vmatpush2.bf16.msra.mxu0 0
      %897 = vmatprep.subr.bf16.mxu0 0
      %898 = vmatpush2.bf16.msra.mxu0 0
      %899 = vmatprep.subr.bf16.mxu0 0
      %900 = vmatpush2.bf16.msra.mxu0 0
      %901 = vmatprep.subr.bf16.mxu0 0
      %902 = vmatpush2.bf16.msra.mxu0 0
      %903 = vmatprep.mubr.bf16.mxu0 0
      %904 = vmatmul.mubr.bf16.gmra.mxu0 %v799
      %v905 = vpop.f32.mrf.mxu0
      %v906 = vadd.f32 %v821, %v905
      %v907 = vpop.f32.mrf.mxu0
      %v908 = vpop.f32.mrf.mxu0
      %v909 = vadd.f32 %v821, %v908
      %v910 = vpop.f32.mrf.mxu0
      %911 = vdwg.mxu0
      %v912 = vadd.f32 %v484, %v906
      %v913 = vadd.f32 %v485, %v909
      %v914 = vmul.f32 %v912, 0.70710677
      %v915 = vmul.f32 %v913, 0.70710677
      %v916 = vsel %vm584, %v914, %v906
      %v917 = vsel %vm584, %v915, %v909
      %vm918 = vcmask 97280
      %919 = vst.msk [vmem:[%s481] sm:$0xff] %vm918, %v916
      %920 = vst.msk [vmem:[%s481 + $0x8] sm:$0xff] %vm918, %v917
      %s921 = smul.u32 2, %s25
      %p922 = scmp.lt.s32.totalorder %s24, 1
      %s923 = scalar_select %p922, %s24, 1
      %p924 = scmp.lt.s32.totalorder %s921, 1
      %s925 = scalar_select %p924, %s921, 1
      %s926 = smul.addr %s923, 2
      %s927 = sadd.s32 %s925, %s926
      %s928 = smul.addr %s927, 8
      %s929 = scalar_lea.vmem %s9, %s928
      // Predicated region
      $region57: #{tpu_custom_call.1} parent=55 // pred_check
        %p930 = pneg %p271
      $region58: #{tpu_custom_call.1} parent=55 // pred_check_branch
        %932 = sbr.rel (%p930) target = $region60
      $region59: #{tpu_custom_call.1} parent=55 // pred_region
        %s933 = smul.u32 2, %s25
      $region60: #{tpu_custom_call.1} parent=55 // pred_fallthru
        _
    $region56: #{tpu_custom_call.1} parent=5 // pred_fallthru
      _
    %p934 = scmp.le.s32.totalorder 2, %s15
    // Predicated region
    $region61: #{tpu_custom_call.1} parent=5 // pred_check
      %p935 = pneg %p934
    $region62: #{tpu_custom_call.1} parent=5 // pred_check_branch
      %937 = sbr.rel (%p935) target = $region64
    $region63: #{tpu_custom_call.1} parent=5 // pred_region
      %s938 = ssub.s32 %s15, 2
      // Predicated region
      $region65: #{tpu_custom_call.1} parent=63 // pred_check
        %p939 = pneg %p277
      $region66: #{tpu_custom_call.1} parent=63 // pred_check_branch
        %941 = sbr.rel (%p939) target = $region68
      $region67: #{tpu_custom_call.1} parent=63 // pred_region
        %s942 = smul.u32 2, %s27
        %p943 = scmp.lt.s32.totalorder %s26, 1
        %s944 = scalar_select %p943, %s26, 1
        %p945 = scmp.lt.s32.totalorder %s942, 1
        %s946 = scalar_select %p945, %s942, 1
        %s947 = smul.addr %s944, 2
        %s948 = sadd.s32 %s946, %s947
        %s949 = smul.addr %s948, 8
        %s950 = scalar_lea.vmem %s9, %s949
      $region68: #{tpu_custom_call.1} parent=63 // pred_fallthru
        _
    $region64: #{tpu_custom_call.1} parent=5 // pred_fallthru
      _
  $region6: #{tpu_custom_call.1} parent=0 // loop_footer
    %s19 = sadd.s32 1, %s15
  $region7: #{tpu_custom_call.1} parent=0 // loop_footer_branch
    %14 = sbr.rel target = $region3
  $region8: #{tpu_custom_call.1} parent=0 // loop_exit
    _

</llo_original>
